<compile_context>
chip_gen: v7x
topology: tpu7x:2x2x1
jax: 0.10.0
libtpu: 0.0.40
codegen_flags: <defaults>
</compile_context>

<pallas_src>
import functools

import jax
import jax.numpy as jnp
from jax import lax
from jax.experimental import pallas as pl
from jax.experimental.pallas import tpu as pltpu

EPS = 1e-5


def bottleneck_kernel(x_ref, w_ref, gb_ref, out_ref, *, H, W, Cin, Cw, Cout):
    """Lane-dense Bottleneck forward.

    x_ref  : (Cin, S) f32, S = N*H*W flattened as n*H*W + h*W + w (lanes).
    w_ref  : (Cmax, Cin + 9*Cw + Cw) bf16 packed [w1 | w2-im2col | w3].
    gb_ref : (Cmax, 6) f32 packed [g1 b1 g2 b2 g3 b3] per channel row.
    out_ref: (Cout, S) f32.
    """
    S = x_ref.shape[1]
    inv_S = 1.0 / float(S)

    x = x_ref[...]          # (Cin, S) f32
    gb = gb_ref[...]        # (Cmax, 6) f32

    g1, b1 = gb[0:Cw, 0:1], gb[0:Cw, 1:2]
    g2, b2 = gb[0:Cw, 2:3], gb[0:Cw, 3:4]
    g3, b3 = gb[0:Cout, 4:5], gb[0:Cout, 5:6]

    def batchnorm(y, g, b, relu):
        # Training-mode BatchNorm2d (biased variance), single pass:
        # per-channel stats reduce over the lane axis (= all N*H*W positions).
        mean = jnp.sum(y, axis=1, keepdims=True) * inv_S
        ex2 = jnp.sum(y * y, axis=1, keepdims=True) * inv_S
        var = jnp.maximum(ex2 - mean * mean, 0.0)   # guard cancellation
        scale = g * lax.rsqrt(var + EPS)
        shift = b - mean * scale
        y = y * scale + shift
        return jnp.maximum(y, 0.0) if relu else y

    # ---- conv1: 1x1  ->  (Cw, Cin) @ (Cin, S) ----
    w1 = w_ref[0:Cw, 0:Cin]                               # bf16 (pre-packed)
    y = jnp.dot(w1, x.astype(jnp.bfloat16), preferred_element_type=jnp.float32)
    y = batchnorm(y, g1, b1, relu=True)

    # ---- conv2: 3x3, stride 1, padding 1 — fused 9-tap im2col, ONE matmul ----
    lane = lax.broadcasted_iota(jnp.int32, (1, S), 1)
    HW = H * W
    if (W & (W - 1)) == 0 and (HW & (HW - 1)) == 0:
        wpos = jnp.bitwise_and(lane, W - 1)
        hpos = jnp.right_shift(jnp.bitwise_and(lane, HW - 1), W.bit_length() - 1)
    else:
        # TODO(synk): pass hpos/wpos (or the 6 boundary masks) in as a tiny
        # extra input for non-pow2 W to avoid VPU integer div/mod.
        wpos = lane % W
        hpos = (lane % HW) // W

    # Precompute boundary row-masks once (dh/dw == 0 needs no mask).
    h_ok = {-1: hpos >= 1, 0: None, 1: hpos <= H - 2}
    w_ok = {-1: wpos >= 1, 0: None, 1: wpos <= W - 2}

    taps = []
    for kh in range(3):
        dh = kh - 1
        for kw in range(3):
            dw = kw - 1
            d = dh * W + dw
            # tap[p] = y[(p + d) mod S]; wrapped lanes are killed by the masks.
            tap = y if d == 0 else pltpu.roll(y, shift=(-d) % S, axis=1)
            m = h_ok[dh]
            if w_ok[dw] is not None:
                m = w_ok[dw] if m is None else (m & w_ok[dw])
            if m is not None:
                tap = jnp.where(m, tap, 0.0)
            taps.append(tap)
    im2col = jnp.concatenate(taps, axis=0).astype(jnp.bfloat16)   # (9*Cw, S)
    w2p = w_ref[0:Cw, Cin:Cin + 9 * Cw]                            # bf16, contiguous
    y = jnp.dot(w2p, im2col, preferred_element_type=jnp.float32)
    y = batchnorm(y, g2, b2, relu=True)

    # ---- conv3: 1x1 + bn3 (no relu yet) ----
    w3 = w_ref[0:Cout, Cin + 9 * Cw:Cin + 9 * Cw + Cw]             # bf16
    y = jnp.dot(w3, y.astype(jnp.bfloat16), preferred_element_type=jnp.float32)
    y = batchnorm(y, g3, b3, relu=False)

    # ---- identity residual (downsample is None -> Cout == Cin) + final relu ----
    out_ref[...] = jnp.maximum(y + x, 0.0).astype(out_ref.dtype)


def pack_bottleneck_params(params):
    """One-time packing (hoisted out of the per-call path).

    Returns:
      wpack: (Cmax, Cin + 9*Cw + Cw) bf16  [w1 | w2-im2col | w3]
      gb   : (Cmax, 6) f32                 [g1 b1 g2 b2 g3 b3]
      dims : (Cin, Cw, Cout)
    """
    w1, w2, w3, g1, b1, g2, b2, g3, b3 = params
    Cw, Cin = w1.shape
    Cout = w3.shape[0]
    Cmax = max(Cw, Cout)

    # w2: torch (Cw, Cw, 3, 3) OIHW -> im2col (Cw, 9*Cw), col = (kh*3+kw)*Cw + cin.
    w2p = jnp.transpose(w2, (0, 2, 3, 1)).reshape(Cw, 9 * Cw)
    K = Cin + 9 * Cw + Cw
    wpack = jnp.zeros((Cmax, K), jnp.float32)
    wpack = wpack.at[:Cw, :Cin].set(w1)
    wpack = wpack.at[:Cw, Cin:Cin + 9 * Cw].set(w2p)
    wpack = wpack.at[:Cout, Cin + 9 * Cw:].set(w3)
    wpack = wpack.astype(jnp.bfloat16)

    def _pad_c(v):
        return jnp.pad(v, (0, Cmax - v.shape[0]))
    gb = jnp.stack([_pad_c(g1), _pad_c(b1), _pad_c(g2), _pad_c(b2),
                    _pad_c(g3), _pad_c(b3)], axis=1).astype(jnp.float32)
    return wpack, gb, (Cin, Cw, Cout)


def bottleneck_forward_2d(x2d, wpack, gb, *, H, W, Cin, Cw, Cout):
    """Lane-dense entry point: x2d is (Cin, S).  Use this between blocks so the
    NCHW <-> (C, S) transposes only happen at the stem / head."""
    S = x2d.shape[1]
    vmem = lambda: pl.BlockSpec(memory_space=pltpu.MemorySpace.VMEM)
    return pl.pallas_call(
        functools.partial(bottleneck_kernel, H=H, W=W, Cin=Cin, Cw=Cw, Cout=Cout),
        out_shape=jax.ShapeDtypeStruct((Cout, S), x2d.dtype),
        in_specs=[vmem(), vmem(), vmem()],
        out_specs=vmem(),
    )(x2d, wpack, gb)


def bottleneck_forward(x_nchw, wpack, gb, dims):
    """NCHW convenience wrapper for a single block."""
    Cin, Cw, Cout = dims
    if Cout != Cin:
        raise ValueError("identity residual path requires Cout == Cin (downsample=None)")
    N, C, H, W = x_nchw.shape
    S = N * H * W
    x2d = jnp.transpose(x_nchw, (1, 0, 2, 3)).reshape(Cin, S)
    out2d = bottleneck_forward_2d(x2d, wpack, gb, H=H, W=W, Cin=Cin, Cw=Cw, Cout=Cout)
    return jnp.transpose(out2d.reshape(Cout, N, H, W), (1, 0, 2, 3))


def bottleneck_reference(x, params):
    """Pure-JAX reference in PyTorch layouts (training-mode BN, biased variance)."""
    w1, w2, w3, g1, b1, g2, b2, g3, b3 = params

    def bn(y, g, b, relu):
        mean = jnp.mean(y, axis=(0, 2, 3), keepdims=True)
        var = jnp.mean((y - mean) ** 2, axis=(0, 2, 3), keepdims=True)
        y = ((y - mean) * lax.rsqrt(var + EPS) * g.reshape(1, -1, 1, 1)
             + b.reshape(1, -1, 1, 1))
        return jnp.maximum(y, 0.0) if relu else y

    dn = ('NCHW', 'OIHW', 'NCHW')
    y = lax.conv_general_dilated(x, w1[:, :, None, None], (1, 1), 'VALID',
                                 dimension_numbers=dn)
    y = bn(y, g1, b1, True)
    y = lax.conv_general_dilated(y, w2, (1, 1), ((1, 1), (1, 1)),
                                 dimension_numbers=dn)
    y = bn(y, g2, b2, True)
    y = lax.conv_general_dilated(y, w3[:, :, None, None], (1, 1), 'VALID',
                                 dimension_numbers=dn)
    y = bn(y, g3, b3, False)
    return jnp.maximum(y + x, 0.0)


if __name__ == "__main__":
    # Bottleneck(inplanes=16, planes=4): width = 4, expansion = 4 -> out channels = 16
    inplanes, planes, expansion = 16, 4, 4
    base_width, groups = 64, 1
    width = int(planes * (base_width / 64.0)) * groups
    cout = planes * expansion
    N, H, W = 4, 8, 8                      # N*H*W = 256 -> fills 256-wide MXU (v6e/v7x)

    key = jax.random.PRNGKey(0)
    ks = jax.random.split(key, 10)

    x = jax.random.normal(ks[0], (N, inplanes, H, W), jnp.float32)

    # Conv weights in PyTorch layouts (1x1 kernels squeezed to 2-D, conv2 in OIHW).
    w1 = 0.2 * jax.random.normal(ks[1], (width, inplanes), jnp.float32)
    w2 = 0.2 * jax.random.normal(ks[2], (width, width, 3, 3), jnp.float32)
    w3 = 0.2 * jax.random.normal(ks[3], (cout, width), jnp.float32)

    # BatchNorm affine params (gamma, beta), shaped (C,).
    g1 = 1.0 + 0.1 * jax.random.normal(ks[4], (width,), jnp.float32)
    b1 = 0.1 * jax.random.normal(ks[5], (width,), jnp.float32)
    g2 = 1.0 + 0.1 * jax.random.normal(ks[6], (width,), jnp.float32)
    b2 = 0.1 * jax.random.normal(ks[7], (width,), jnp.float32)
    g3 = 1.0 + 0.1 * jax.random.normal(ks[8], (cout,), jnp.float32)
    b3 = 0.1 * jax.random.normal(ks[9], (cout,), jnp.float32)

    params = (w1, w2, w3, g1, b1, g2, b2, g3, b3)

    # One-time parameter packing (not in the per-forward path).
    wpack, gb, dims = pack_bottleneck_params(params)
    wpack, gb = jax.block_until_ready((wpack, gb))

    out = jax.block_until_ready(bottleneck_forward(x, wpack, gb, dims))
    ref = bottleneck_reference(x, params)

    assert out.shape == (N, cout, H, W), out.shape
    max_err = float(jnp.max(jnp.abs(out - ref)))
    # bf16 MXU inputs (f32 accumulation) -> slightly looser tolerance than pure f32.
    assert jnp.allclose(out, ref, atol=4e-2, rtol=4e-2), (
        "mismatch vs reference: max abs err = %f" % max_err)

    print("KERNEL_OK")
</pallas_src>

<mosaic_0001>
module attributes {stable_mosaic.version = 11 : i64} {
  func.func @bottleneck_kernel(%arg0: memref<16x256xf32, #tpu.memory_space<vmem>>, %arg1: memref<16x56xbf16, #tpu.memory_space<vmem>>, %arg2: memref<16x6xf32, #tpu.memory_space<vmem>>, %arg3: memref<16x256xf32, #tpu.memory_space<vmem>>) attributes {dimension_semantics = [], scalar_prefetch = 0 : i64, scratch_operands = 0 : i64, tpu.core_type = #tpu.core_type<tc>} {
    %c0 = arith.constant 0 : index
    %c0_0 = arith.constant 0 : index
    %0 = vector.load %arg0[%c0, %c0_0] : memref<16x256xf32, #tpu.memory_space<vmem>>, vector<16x256xf32>
    %c0_1 = arith.constant 0 : index
    %c0_2 = arith.constant 0 : index
    %1 = vector.load %arg2[%c0_1, %c0_2] : memref<16x6xf32, #tpu.memory_space<vmem>>, vector<16x6xf32>
    %2 = vector.extract_strided_slice %1 {offsets = [0, 0], sizes = [4, 1], strides = [1, 1]} : vector<16x6xf32> to vector<4x1xf32>
    %3 = vector.extract_strided_slice %1 {offsets = [0, 1], sizes = [4, 1], strides = [1, 1]} : vector<16x6xf32> to vector<4x1xf32>
    %4 = vector.extract_strided_slice %1 {offsets = [0, 2], sizes = [4, 1], strides = [1, 1]} : vector<16x6xf32> to vector<4x1xf32>
    %5 = vector.extract_strided_slice %1 {offsets = [0, 3], sizes = [4, 1], strides = [1, 1]} : vector<16x6xf32> to vector<4x1xf32>
    %6 = vector.extract_strided_slice %1 {offsets = [0, 4], sizes = [16, 1], strides = [1, 1]} : vector<16x6xf32> to vector<16x1xf32>
    %7 = vector.extract_strided_slice %1 {offsets = [0, 5], sizes = [16, 1], strides = [1, 1]} : vector<16x6xf32> to vector<16x1xf32>
    %c0_3 = arith.constant 0 : index
    %c0_4 = arith.constant 0 : index
    %8 = vector.load %arg1[%c0_3, %c0_4] : memref<16x56xbf16, #tpu.memory_space<vmem>>, vector<4x16xbf16>
    %9 = arith.truncf %0 : vector<16x256xf32> to vector<16x256xbf16>
    %cst = arith.constant dense<0.000000e+00> : vector<4x256xf32>
    %10 = tpu.matmul %8, %9, %cst {dimension_numbers = #tpu.dot_dimension_numbers<[1], [0], [0], [1], [0, 0, 1, 1], [], []>} : vector<4x16xbf16>, vector<16x256xbf16>, vector<4x256xf32> -> vector<4x256xf32>
    %cst_5 = arith.constant dense<0.000000e+00> : vector<4xf32>
    %11 = vector.multi_reduction <add>, %10, %cst_5 [1] : vector<4x256xf32> to vector<4xf32>
    %12 = vector.shape_cast %11 : vector<4xf32> to vector<4x1xf32>
    %cst_6 = arith.constant 3.906250e-03 : f32
    %13 = vector.broadcast %cst_6 : f32 to vector<4x1xf32>
    %14 = arith.mulf %12, %13 : vector<4x1xf32>
    %15 = arith.mulf %10, %10 : vector<4x256xf32>
    %cst_7 = arith.constant dense<0.000000e+00> : vector<4xf32>
    %16 = vector.multi_reduction <add>, %15, %cst_7 [1] : vector<4x256xf32> to vector<4xf32>
    %17 = vector.shape_cast %16 : vector<4xf32> to vector<4x1xf32>
    %cst_8 = arith.constant 3.906250e-03 : f32
    %18 = vector.broadcast %cst_8 : f32 to vector<4x1xf32>
    %19 = arith.mulf %17, %18 : vector<4x1xf32>
    %20 = arith.mulf %14, %14 : vector<4x1xf32>
    %21 = arith.subf %19, %20 : vector<4x1xf32>
    %cst_9 = arith.constant 0.000000e+00 : f32
    %22 = vector.broadcast %cst_9 : f32 to vector<4x1xf32>
    %23 = arith.maximumf %21, %22 : vector<4x1xf32>
    %cst_10 = arith.constant 9.99999974E-6 : f32
    %24 = vector.broadcast %cst_10 : f32 to vector<4x1xf32>
    %25 = arith.addf %23, %24 : vector<4x1xf32>
    %26 = math.rsqrt %25 : vector<4x1xf32>
    %27 = arith.mulf %2, %26 : vector<4x1xf32>
    %28 = arith.mulf %14, %27 : vector<4x1xf32>
    %29 = arith.subf %3, %28 : vector<4x1xf32>
    %30 = vector.broadcast %27 : vector<4x1xf32> to vector<4x256xf32>
    %31 = arith.mulf %10, %30 : vector<4x256xf32>
    %32 = vector.broadcast %29 : vector<4x1xf32> to vector<4x256xf32>
    %33 = arith.addf %31, %32 : vector<4x256xf32>
    %cst_11 = arith.constant 0.000000e+00 : f32
    %34 = vector.broadcast %cst_11 : f32 to vector<4x256xf32>
    %35 = arith.maximumf %33, %34 : vector<4x256xf32>
    %36 = tpu.iota {dimensions = array<i32: 1>} : vector<1x256xi32>
    %c7_i32 = arith.constant 7 : i32
    %37 = vector.broadcast %c7_i32 : i32 to vector<1x256xi32>
    %38 = arith.andi %36, %37 : vector<1x256xi32>
    %c63_i32 = arith.constant 63 : i32
    %39 = vector.broadcast %c63_i32 : i32 to vector<1x256xi32>
    %40 = arith.andi %36, %39 : vector<1x256xi32>
    %c3_i32 = arith.constant 3 : i32
    %41 = vector.broadcast %c3_i32 : i32 to vector<1x256xi32>
    %42 = arith.shrsi %40, %41 : vector<1x256xi32>
    %c1_i32 = arith.constant 1 : i32
    %43 = vector.broadcast %c1_i32 : i32 to vector<1x256xi32>
    %44 = arith.cmpi sge, %42, %43 : vector<1x256xi32>
    %c6_i32 = arith.constant 6 : i32
    %45 = vector.broadcast %c6_i32 : i32 to vector<1x256xi32>
    %46 = arith.cmpi sle, %42, %45 : vector<1x256xi32>
    %c1_i32_12 = arith.constant 1 : i32
    %47 = vector.broadcast %c1_i32_12 : i32 to vector<1x256xi32>
    %48 = arith.cmpi sge, %38, %47 : vector<1x256xi32>
    %c6_i32_13 = arith.constant 6 : i32
    %49 = vector.broadcast %c6_i32_13 : i32 to vector<1x256xi32>
    %50 = arith.cmpi sle, %38, %49 : vector<1x256xi32>
    %c9_i32 = arith.constant 9 : i32
    %51 = tpu.dynamic_rotate %35 by %c9_i32 dim 1 : vector<4x256xf32>, i32 -> vector<4x256xf32>
    %52 = arith.andi %44, %48 : vector<1x256xi1>
    %cst_14 = arith.constant 0.000000e+00 : f32
    %53 = vector.shape_cast %52 : vector<1x256xi1> to vector<1x256xi1>
    %54 = vector.broadcast %53 : vector<1x256xi1> to vector<4x256xi1>
    %55 = vector.broadcast %cst_14 : f32 to vector<4x256xf32>
    %56 = arith.select %54, %51, %55 : vector<4x256xi1>, vector<4x256xf32>
    %c8_i32 = arith.constant 8 : i32
    %57 = tpu.dynamic_rotate %35 by %c8_i32 dim 1 : vector<4x256xf32>, i32 -> vector<4x256xf32>
    %cst_15 = arith.constant 0.000000e+00 : f32
    %58 = vector.shape_cast %44 : vector<1x256xi1> to vector<1x256xi1>
    %59 = vector.broadcast %58 : vector<1x256xi1> to vector<4x256xi1>
    %60 = vector.broadcast %cst_15 : f32 to vector<4x256xf32>
    %61 = arith.select %59, %57, %60 : vector<4x256xi1>, vector<4x256xf32>
    %c7_i32_16 = arith.constant 7 : i32
    %62 = tpu.dynamic_rotate %35 by %c7_i32_16 dim 1 : vector<4x256xf32>, i32 -> vector<4x256xf32>
    %63 = arith.andi %44, %50 : vector<1x256xi1>
    %cst_17 = arith.constant 0.000000e+00 : f32
    %64 = vector.shape_cast %63 : vector<1x256xi1> to vector<1x256xi1>
    %65 = vector.broadcast %64 : vector<1x256xi1> to vector<4x256xi1>
    %66 = vector.broadcast %cst_17 : f32 to vector<4x256xf32>
    %67 = arith.select %65, %62, %66 : vector<4x256xi1>, vector<4x256xf32>
    %c1_i32_18 = arith.constant 1 : i32
    %68 = tpu.dynamic_rotate %35 by %c1_i32_18 dim 1 : vector<4x256xf32>, i32 -> vector<4x256xf32>
    %cst_19 = arith.constant 0.000000e+00 : f32
    %69 = vector.shape_cast %48 : vector<1x256xi1> to vector<1x256xi1>
    %70 = vector.broadcast %69 : vector<1x256xi1> to vector<4x256xi1>
    %71 = vector.broadcast %cst_19 : f32 to vector<4x256xf32>
    %72 = arith.select %70, %68, %71 : vector<4x256xi1>, vector<4x256xf32>
    %c255_i32 = arith.constant 255 : i32
    %73 = tpu.dynamic_rotate %35 by %c255_i32 dim 1 : vector<4x256xf32>, i32 -> vector<4x256xf32>
    %cst_20 = arith.constant 0.000000e+00 : f32
    %74 = vector.shape_cast %50 : vector<1x256xi1> to vector<1x256xi1>
    %75 = vector.broadcast %74 : vector<1x256xi1> to vector<4x256xi1>
    %76 = vector.broadcast %cst_20 : f32 to vector<4x256xf32>
    %77 = arith.select %75, %73, %76 : vector<4x256xi1>, vector<4x256xf32>
    %c249_i32 = arith.constant 249 : i32
    %78 = tpu.dynamic_rotate %35 by %c249_i32 dim 1 : vector<4x256xf32>, i32 -> vector<4x256xf32>
    %79 = arith.andi %46, %48 : vector<1x256xi1>
    %cst_21 = arith.constant 0.000000e+00 : f32
    %80 = vector.shape_cast %79 : vector<1x256xi1> to vector<1x256xi1>
    %81 = vector.broadcast %80 : vector<1x256xi1> to vector<4x256xi1>
    %82 = vector.broadcast %cst_21 : f32 to vector<4x256xf32>
    %83 = arith.select %81, %78, %82 : vector<4x256xi1>, vector<4x256xf32>
    %c248_i32 = arith.constant 248 : i32
    %84 = tpu.dynamic_rotate %35 by %c248_i32 dim 1 : vector<4x256xf32>, i32 -> vector<4x256xf32>
    %cst_22 = arith.constant 0.000000e+00 : f32
    %85 = vector.shape_cast %46 : vector<1x256xi1> to vector<1x256xi1>
    %86 = vector.broadcast %85 : vector<1x256xi1> to vector<4x256xi1>
    %87 = vector.broadcast %cst_22 : f32 to vector<4x256xf32>
    %88 = arith.select %86, %84, %87 : vector<4x256xi1>, vector<4x256xf32>
    %c247_i32 = arith.constant 247 : i32
    %89 = tpu.dynamic_rotate %35 by %c247_i32 dim 1 : vector<4x256xf32>, i32 -> vector<4x256xf32>
    %90 = arith.andi %46, %50 : vector<1x256xi1>
    %cst_23 = arith.constant 0.000000e+00 : f32
    %91 = vector.shape_cast %90 : vector<1x256xi1> to vector<1x256xi1>
    %92 = vector.broadcast %91 : vector<1x256xi1> to vector<4x256xi1>
    %93 = vector.broadcast %cst_23 : f32 to vector<4x256xf32>
    %94 = arith.select %92, %89, %93 : vector<4x256xi1>, vector<4x256xf32>
    %95 = tpu.concatenate %56, %61, %67, %72, %35, %77, %83, %88, %94 in 0 : vector<4x256xf32>, vector<4x256xf32>, vector<4x256xf32>, vector<4x256xf32>, vector<4x256xf32>, vector<4x256xf32>, vector<4x256xf32>, vector<4x256xf32>, vector<4x256xf32> -> vector<36x256xf32>
    %96 = arith.truncf %95 : vector<36x256xf32> to vector<36x256xbf16>
    %c0_24 = arith.constant 0 : index
    %c16 = arith.constant 16 : index
    %97 = vector.load %arg1[%c0_24, %c16] : memref<16x56xbf16, #tpu.memory_space<vmem>>, vector<4x36xbf16>
    %cst_25 = arith.constant dense<0.000000e+00> : vector<4x256xf32>
    %98 = tpu.matmul %97, %96, %cst_25 {dimension_numbers = #tpu.dot_dimension_numbers<[1], [0], [0], [1], [0, 0, 1, 1], [], []>} : vector<4x36xbf16>, vector<36x256xbf16>, vector<4x256xf32> -> vector<4x256xf32>
    %cst_26 = arith.constant dense<0.000000e+00> : vector<4xf32>
    %99 = vector.multi_reduction <add>, %98, %cst_26 [1] : vector<4x256xf32> to vector<4xf32>
    %100 = vector.shape_cast %99 : vector<4xf32> to vector<4x1xf32>
    %cst_27 = arith.constant 3.906250e-03 : f32
    %101 = vector.broadcast %cst_27 : f32 to vector<4x1xf32>
    %102 = arith.mulf %100, %101 : vector<4x1xf32>
    %103 = arith.mulf %98, %98 : vector<4x256xf32>
    %cst_28 = arith.constant dense<0.000000e+00> : vector<4xf32>
    %104 = vector.multi_reduction <add>, %103, %cst_28 [1] : vector<4x256xf32> to vector<4xf32>
    %105 = vector.shape_cast %104 : vector<4xf32> to vector<4x1xf32>
    %cst_29 = arith.constant 3.906250e-03 : f32
    %106 = vector.broadcast %cst_29 : f32 to vector<4x1xf32>
    %107 = arith.mulf %105, %106 : vector<4x1xf32>
    %108 = arith.mulf %102, %102 : vector<4x1xf32>
    %109 = arith.subf %107, %108 : vector<4x1xf32>
    %cst_30 = arith.constant 0.000000e+00 : f32
    %110 = vector.broadcast %cst_30 : f32 to vector<4x1xf32>
    %111 = arith.maximumf %109, %110 : vector<4x1xf32>
    %cst_31 = arith.constant 9.99999974E-6 : f32
    %112 = vector.broadcast %cst_31 : f32 to vector<4x1xf32>
    %113 = arith.addf %111, %112 : vector<4x1xf32>
    %114 = math.rsqrt %113 : vector<4x1xf32>
    %115 = arith.mulf %4, %114 : vector<4x1xf32>
    %116 = arith.mulf %102, %115 : vector<4x1xf32>
    %117 = arith.subf %5, %116 : vector<4x1xf32>
    %118 = vector.broadcast %115 : vector<4x1xf32> to vector<4x256xf32>
    %119 = arith.mulf %98, %118 : vector<4x256xf32>
    %120 = vector.broadcast %117 : vector<4x1xf32> to vector<4x256xf32>
    %121 = arith.addf %119, %120 : vector<4x256xf32>
    %cst_32 = arith.constant 0.000000e+00 : f32
    %122 = vector.broadcast %cst_32 : f32 to vector<4x256xf32>
    %123 = arith.maximumf %121, %122 : vector<4x256xf32>
    %c0_33 = arith.constant 0 : index
    %c52 = arith.constant 52 : index
    %124 = vector.load %arg1[%c0_33, %c52] : memref<16x56xbf16, #tpu.memory_space<vmem>>, vector<16x4xbf16>
    %125 = arith.truncf %123 : vector<4x256xf32> to vector<4x256xbf16>
    %cst_34 = arith.constant dense<0.000000e+00> : vector<16x256xf32>
    %126 = tpu.matmul %124, %125, %cst_34 {dimension_numbers = #tpu.dot_dimension_numbers<[1], [0], [0], [1], [0, 0, 1, 1], [], []>} : vector<16x4xbf16>, vector<4x256xbf16>, vector<16x256xf32> -> vector<16x256xf32>
    %cst_35 = arith.constant dense<0.000000e+00> : vector<16xf32>
    %127 = vector.multi_reduction <add>, %126, %cst_35 [1] : vector<16x256xf32> to vector<16xf32>
    %128 = vector.shape_cast %127 : vector<16xf32> to vector<16x1xf32>
    %cst_36 = arith.constant 3.906250e-03 : f32
    %129 = vector.broadcast %cst_36 : f32 to vector<16x1xf32>
    %130 = arith.mulf %128, %129 : vector<16x1xf32>
    %131 = arith.mulf %126, %126 : vector<16x256xf32>
    %cst_37 = arith.constant dense<0.000000e+00> : vector<16xf32>
    %132 = vector.multi_reduction <add>, %131, %cst_37 [1] : vector<16x256xf32> to vector<16xf32>
    %133 = vector.shape_cast %132 : vector<16xf32> to vector<16x1xf32>
    %cst_38 = arith.constant 3.906250e-03 : f32
    %134 = vector.broadcast %cst_38 : f32 to vector<16x1xf32>
    %135 = arith.mulf %133, %134 : vector<16x1xf32>
    %136 = arith.mulf %130, %130 : vector<16x1xf32>
    %137 = arith.subf %135, %136 : vector<16x1xf32>
    %cst_39 = arith.constant 0.000000e+00 : f32
    %138 = vector.broadcast %cst_39 : f32 to vector<16x1xf32>
    %139 = arith.maximumf %137, %138 : vector<16x1xf32>
    %cst_40 = arith.constant 9.99999974E-6 : f32
    %140 = vector.broadcast %cst_40 : f32 to vector<16x1xf32>
    %141 = arith.addf %139, %140 : vector<16x1xf32>
    %142 = math.rsqrt %141 : vector<16x1xf32>
    %143 = arith.mulf %6, %142 : vector<16x1xf32>
    %144 = arith.mulf %130, %143 : vector<16x1xf32>
    %145 = arith.subf %7, %144 : vector<16x1xf32>
    %146 = vector.broadcast %143 : vector<16x1xf32> to vector<16x256xf32>
    %147 = arith.mulf %126, %146 : vector<16x256xf32>
    %148 = vector.broadcast %145 : vector<16x1xf32> to vector<16x256xf32>
    %149 = arith.addf %147, %148 : vector<16x256xf32>
    %150 = arith.addf %149, %0 : vector<16x256xf32>
    %cst_41 = arith.constant 0.000000e+00 : f32
    %151 = vector.broadcast %cst_41 : f32 to vector<16x256xf32>
    %152 = arith.maximumf %150, %151 : vector<16x256xf32>
    %c0_42 = arith.constant 0 : index
    %c0_43 = arith.constant 0 : index
    %153 = vector.load %arg3[%c0_42, %c0_43] : memref<16x256xf32, #tpu.memory_space<vmem>>, vector<16x256xf32>
    tpu.vector_store %arg3[%c0_42, %c0_43], %152 {strides = array<i32>} : memref<16x256xf32, #tpu.memory_space<vmem>>, vector<16x256xf32>,
    return
  }
}

</mosaic_0001>

<llo_original>
// kernel: tpu_custom_call.1
$region0: #{tpu_custom_call.1}
  #allocation0 [shape = 'u32[]', space=smem, size = 0x4, offset = 0x4, fixed_abs, tag = 'smem constant byte address 0x4 - core index']
  #allocation1 [shape = 'u32[144,128]{1,0:T(1,128)}', space=vmem, size = 0x12000, scoped, tag = 'internal scratch']
  %s0 = inlined_call_operand.hbm [shape: f32[16,256], index: 0, kind: input, shape index: {}]
  %s1 = inlined_call_operand.vmem [shape: bf16[16,56], index: 1, kind: input, shape index: {}]
  %s2 = inlined_call_operand.vmem [shape: f32[16,6], index: 2, kind: input, shape index: {}]
  %s3 = inlined_call_operand.hbm [shape: f32[16,256], index: 3, kind: output, shape index: {}]
  %s4 = sld [smem:[#allocation0]]
  $region26: #{tpu_custom_call.1} parent=0
    _
  %s6 = ssub.s32 1, %s4
  %s7 = scalar_select 0, %s6, %s4
  $region1: #{tpu_custom_call.1} parent=0
    #allocation2 [shape = 'u8[16384]{0}', space=vmem, size = 0x4000, scoped, tag = 'input window, operand 0, single buffered']
    #allocation3 [shape = 's32[1]{0}', space=sflag, size = 0x4, scoped, tag = 'scoped memory for tpu_custom_call.1']
    #allocation4 [shape = 's32[1]{0}', space=sflag, size = 0x4, scoped, tag = 'scoped memory for tpu_custom_call.1']
    #allocation5 [shape = 'u8[16384]{0}', space=vmem, size = 0x4000, scoped, tag = 'output window, operand 0, single buffered']
    %8 = vsyncpa [#allocation3], 0
    %9 = vsyncpa [#allocation4], 0
    // Predicated region
    $region2: #{tpu_custom_call.1} parent=1 // pred_check
      _
    $region3: #{tpu_custom_call.1} parent=1 // pred_check_branch
      %11 = sbr.rel (0) target = $region5
    $region4: #{tpu_custom_call.1} parent=1 // pred_region
      %s13 = ssub.s32 512, 512
      %14 = vsyncadd [#allocation3], %s13
      %s15 = sshll.u32 [#allocation2], 4
      %s16 = int_to_ptr.vmem [resolvable:$true] %s15
      %21 = dma.hbm_to_vmem [thread:$0]  %s0, 512, %s16, [#allocation3], 256, 256, 16
    $region5: #{tpu_custom_call.1} parent=1 // pred_fallthru
      _
    // Predicated region
    $region6: #{tpu_custom_call.1} parent=1 // pred_check
      _
    $region7: #{tpu_custom_call.1} parent=1 // pred_check_branch
      %23 = sbr.rel (0) target = $region9
    $region8: #{tpu_custom_call.1} parent=1 // pred_region
      _
    $region9: #{tpu_custom_call.1} parent=1 // pred_fallthru
      _
    // Predicated region
    $region10: #{tpu_custom_call.1} parent=1 // pred_check
      _
    $region11: #{tpu_custom_call.1} parent=1 // pred_check_branch
      %25 = sbr.rel (0) target = $region13
    $region12: #{tpu_custom_call.1} parent=1 // pred_region
      _
    $region13: #{tpu_custom_call.1} parent=1 // pred_fallthru
      _
    // Predicated region
    $region14: #{tpu_custom_call.1} parent=1 // pred_check
      _
    $region15: #{tpu_custom_call.1} parent=1 // pred_check_branch
      %27 = sbr.rel (0) target = $region17
    $region16: #{tpu_custom_call.1} parent=1 // pred_region
      %28 = dma.done [#allocation3], 512
    $region17: #{tpu_custom_call.1} parent=1 // pred_fallthru
      _
    %v30 = vld [vmem:[#allocation2] sm:$0xff]
    %v31 = vld [vmem:[#allocation2 + $0x8] sm:$0xff]
    %v32 = vld [vmem:[#allocation2 + $0x10] sm:$0xff]
    %v33 = vld [vmem:[#allocation2 + $0x18] sm:$0xff]
    %v34 = vld [vmem:[%s2] sm:$0xff]
    %v35 = vld [vmem:[%s2 + $0x8] sm:$0xff]
    %v36 = vld [vmem:[%s1] sm:$0x3]
    %v37 = vpack.c.bf16 %v32, %v30
    %v38 = vpack.c.bf16 %v33, %v31
    %vm39 = vcmask 130048
    %v41 = vsel %vm39, %v36, 0
    %43 = vmatprep.subr.bf16.mxu0 %v38
    %44 = vmatpush1.bf16.msra.mxu0 %v37
    %45 = vmatprep.subr.bf16.mxu0 0
    %46 = vmatpush1.bf16.msra.mxu0 0
    %47 = vmatprep.subr.bf16.mxu0 0
    %48 = vmatpush1.bf16.msra.mxu0 0
    %49 = vmatprep.subr.bf16.mxu0 0
    %50 = vmatpush1.bf16.msra.mxu0 0
    %51 = vmatprep.subr.bf16.mxu0 0
    %52 = vmatpush1.bf16.msra.mxu0 0
    %53 = vmatprep.subr.bf16.mxu0 0
    %54 = vmatpush1.bf16.msra.mxu0 0
    %55 = vmatprep.subr.bf16.mxu0 0
    %56 = vmatpush1.bf16.msra.mxu0 0
    %57 = vmatprep.subr.bf16.mxu0 0
    %58 = vmatpush1.bf16.msra.mxu0 0
    %59 = vmatprep.subr.bf16.mxu0 0
    %60 = vmatpush1.bf16.msra.mxu0 0
    %61 = vmatprep.subr.bf16.mxu0 0
    %62 = vmatpush1.bf16.msra.mxu0 0
    %63 = vmatprep.subr.bf16.mxu0 0
    %64 = vmatpush1.bf16.msra.mxu0 0
    %65 = vmatprep.subr.bf16.mxu0 0
    %66 = vmatpush1.bf16.msra.mxu0 0
    %67 = vmatprep.subr.bf16.mxu0 0
    %68 = vmatpush1.bf16.msra.mxu0 0
    %69 = vmatprep.subr.bf16.mxu0 0
    %70 = vmatpush1.bf16.msra.mxu0 0
    %71 = vmatprep.subr.bf16.mxu0 0
    %72 = vmatpush1.bf16.msra.mxu0 0
    %73 = vmatprep.subr.bf16.mxu0 0
    %74 = vmatpush1.bf16.msra.mxu0 0
    %75 = vmatprep.mubr.bf16.mxu0 0
    %76 = vmatmul.mubr.bf16.gmra.mrb[0].mxu0 %v41
    %v77 = vpop.f32.mrb[0].mxu0
    %v78 = vadd.f32 0.0, %v77
    %v79 = vpop.f32.mrb[0].mxu0
    %v80 = vadd.f32 0.0, %v79
    %v81 = vpop.f32.mrb[0].mxu0
    %v82 = vpop.f32.mrb[0].mxu0
    %83 = vdwg.mxu0
    %vm84 = vcmask 1043456
    %v85 = vsel %vm84, %v78, 0.0
    %v86 = vsel %vm84, %v80, 0.0
    %v87 = vadd.f32 %v85, %v86
    %88 = vadd.xlane.f32.xlu0 %v87
    %v89 = vpop.xlane.xlu0 %88
    %v90 = vmul.f32 %v89, 0.00390625
    %v91 = vmul.f32 %v78, %v78
    %v92 = vmul.f32 %v80, %v80
    %v93 = vsel %vm84, %v91, 0.0
    %v94 = vsel %vm84, %v92, 0.0
    %v95 = vadd.f32 %v93, %v94
    %96 = vadd.xlane.f32.xlu0 %v95
    %v97 = vpop.xlane.xlu0 %96
    %v98 = vmul.f32 %v97, 0.00390625
    %v99 = vmul.f32 %v90, %v90
    %v100 = vsub.f32 %v98, %v99
    %v101 = vmax.f32 %v100, 0.0
    %v102 = vadd.f32 %v101, 1e-05
    %v103 = vrsqrt.pop %v102
    %v104 = vmul.f32 %v34, %v103
    %v105 = vmul.f32 %v90, %v104
    %107 = vrot.lane.b32.xlu0 %v105, 1
    %v108 = vpop.permute.xlu0 %107
    %v110 = vsub.f32 %v34, %v108
    %112 = vset.pattern.permute.xlu0 0
    %113 = vperm.xlu0 %112, %v104
    %v114 = vpop.permute.xlu0 %113
    %v116 = vmul.f32 %v78, %v114
    %v117 = vmul.f32 %v80, %v114
    %119 = vset.pattern.permute.xlu0 1
    %120 = vperm.xlu0 %119, %v110
    %v121 = vpop.permute.xlu0 %120
    %v123 = vadd.f32 %v116, %v121
    %v124 = vadd.f32 %v117, %v121
    %v125 = vmax.f32 %v123, 0.0
    %v126 = vmax.f32 %v124, 0.0
    %v127 = vlaneseq
    %v128 = vand.u32 %v127, 127
    %v129 = vadd.s32 %v128, 128
    %v130 = vand.u32 %v128, 7
    %v131 = vand.u32 %v129, 7
    %v132 = vand.u32 %v128, 63
    %v133 = vand.u32 %v129, 63
    %v134 = vshra.s32 %v132, 3
    %v135 = vshra.s32 %v133, 3
    %vm136 = vcmp.ge.s32.totalorder %v134, 1
    %vm137 = vcmp.ge.s32.totalorder %v135, 1
    %vm138 = vcmp.le.s32.totalorder %v134, 6
    %vm139 = vcmp.le.s32.totalorder %v135, 6
    %vm140 = vcmp.ge.s32.totalorder %v130, 1
    %vm141 = vcmp.ge.s32.totalorder %v131, 1
    %vm142 = vcmp.le.s32.totalorder %v130, 6
    %vm143 = vcmp.le.s32.totalorder %v131, 6
    %144 = vrot.lane.b32.xlu0 %v125, 9
    %v145 = vpop.permute.xlu0 %144
    %146 = vrot.lane.b32.xlu0 %v126, 9
    %v147 = vpop.permute.xlu0 %146
    %vm148 = vcmp.lt.s32.totalorder %v128, 9
    %v149 = vsel %vm148, %v145, %v147
    %v150 = vsel %vm148, %v147, %v145
    %vm151 = vmand %vm136, %vm140
    %vm152 = vmand %vm137, %vm141
    %v153 = vsel %vm151, 1, 0
    %v154 = vsel %vm152, 1, 0
    %vm155 = vcmp.eq.s32.totalorder %v153, 1
    %vm156 = vcmp.eq.s32.totalorder %v154, 1
    %v157 = vsel %vm155, %v150, 0.0
    %v158 = vsel %vm156, %v149, 0.0
    %159 = vrot.lane.b32.xlu0 %v125, 8
    %v160 = vpop.permute.xlu0 %159
    %161 = vrot.lane.b32.xlu0 %v126, 8
    %v162 = vpop.permute.xlu0 %161
    %vm163 = vcmp.lt.s32.totalorder %v128, 8
    %v164 = vsel %vm163, %v160, %v162
    %v165 = vsel %vm163, %v162, %v160
    %v166 = vsel %vm136, 1, 0
    %v167 = vsel %vm137, 1, 0
    %vm168 = vcmp.eq.s32.totalorder %v166, 1
    %vm169 = vcmp.eq.s32.totalorder %v167, 1
    %v170 = vsel %vm168, %v165, 0.0
    %v171 = vsel %vm169, %v164, 0.0
    %172 = vrot.lane.b32.xlu0 %v125, 7
    %v173 = vpop.permute.xlu0 %172
    %174 = vrot.lane.b32.xlu0 %v126, 7
    %v175 = vpop.permute.xlu0 %174
    %vm176 = vcmp.lt.s32.totalorder %v128, 7
    %v177 = vsel %vm176, %v173, %v175
    %v178 = vsel %vm176, %v175, %v173
    %vm179 = vmand %vm136, %vm142
    %vm180 = vmand %vm137, %vm143
    %v181 = vsel %vm179, 1, 0
    %v182 = vsel %vm180, 1, 0
    %vm183 = vcmp.eq.s32.totalorder %v181, 1
    %vm184 = vcmp.eq.s32.totalorder %v182, 1
    %v185 = vsel %vm183, %v178, 0.0
    %v186 = vsel %vm184, %v177, 0.0
    %187 = vrot.lane.b32.xlu0 %v125, 1
    %v188 = vpop.permute.xlu0 %187
    %189 = vrot.lane.b32.xlu0 %v126, 1
    %v190 = vpop.permute.xlu0 %189
    %vm191 = vcmp.lt.s32.totalorder %v128, 1
    %v192 = vsel %vm191, %v188, %v190
    %v193 = vsel %vm191, %v190, %v188
    %v194 = vsel %vm140, 1, 0
    %v195 = vsel %vm141, 1, 0
    %vm196 = vcmp.eq.s32.totalorder %v194, 1
    %vm197 = vcmp.eq.s32.totalorder %v195, 1
    %v198 = vsel %vm196, %v193, 0.0
    %v199 = vsel %vm197, %v192, 0.0
    %200 = vrot.lane.b32.xlu0 %v125, 127
    %v201 = vpop.permute.xlu0 %200
    %202 = vrot.lane.b32.xlu0 %v126, 127
    %v203 = vpop.permute.xlu0 %202
    %vm204 = vcmp.lt.s32.totalorder %v128, 127
    %v205 = vsel %vm204, %v201, %v203
    %v206 = vsel %vm204, %v203, %v201
    %v207 = vsel %vm142, 1, 0
    %v208 = vsel %vm143, 1, 0
    %vm209 = vcmp.eq.s32.totalorder %v207, 1
    %vm210 = vcmp.eq.s32.totalorder %v208, 1
    %v211 = vsel %vm209, %v205, 0.0
    %v212 = vsel %vm210, %v206, 0.0
    %213 = vrot.lane.b32.xlu0 %v125, 121
    %v214 = vpop.permute.xlu0 %213
    %215 = vrot.lane.b32.xlu0 %v126, 121
    %v216 = vpop.permute.xlu0 %215
    %vm217 = vcmp.lt.s32.totalorder %v128, 121
    %v218 = vsel %vm217, %v214, %v216
    %v219 = vsel %vm217, %v216, %v214
    %vm220 = vmand %vm138, %vm140
    %vm221 = vmand %vm139, %vm141
    %v222 = vsel %vm220, 1, 0
    %v223 = vsel %vm221, 1, 0
    %vm224 = vcmp.eq.s32.totalorder %v222, 1
    %vm225 = vcmp.eq.s32.totalorder %v223, 1
    %v226 = vsel %vm224, %v218, 0.0
    %v227 = vsel %vm225, %v219, 0.0
    %228 = vrot.lane.b32.xlu0 %v125, 120
    %v229 = vpop.permute.xlu0 %228
    %230 = vrot.lane.b32.xlu0 %v126, 120
    %v231 = vpop.permute.xlu0 %230
    %vm232 = vcmp.lt.s32.totalorder %v128, 120
    %v233 = vsel %vm232, %v229, %v231
    %v234 = vsel %vm232, %v231, %v229
    %v235 = vsel %vm138, 1, 0
    %v236 = vsel %vm139, 1, 0
    %vm237 = vcmp.eq.s32.totalorder %v235, 1
    %vm238 = vcmp.eq.s32.totalorder %v236, 1
    %v239 = vsel %vm237, %v233, 0.0
    %v240 = vsel %vm238, %v234, 0.0
    %241 = vrot.lane.b32.xlu0 %v125, 119
    %v242 = vpop.permute.xlu0 %241
    %243 = vrot.lane.b32.xlu0 %v126, 119
    %v244 = vpop.permute.xlu0 %243
    %vm245 = vcmp.lt.s32.totalorder %v128, 119
    %v246 = vsel %vm245, %v242, %v244
    %v247 = vsel %vm245, %v244, %v242
    %vm248 = vmand %vm138, %vm142
    %vm249 = vmand %vm139, %vm143
    %v250 = vsel %vm248, 1, 0
    %v251 = vsel %vm249, 1, 0
    %vm252 = vcmp.eq.s32.totalorder %v250, 1
    %vm253 = vcmp.eq.s32.totalorder %v251, 1
    %v254 = vsel %vm252, %v246, 0.0
    %v255 = vsel %vm253, %v247, 0.0
    %v258 = vrot.slane %v170, 4
    %v259 = vrot.slane %v171, 4
    %v264 = vrot.slane %v198, 4
    %v265 = vrot.slane %v199, 4
    %v270 = vrot.slane %v211, 4
    %v271 = vrot.slane %v212, 4
    %v276 = vrot.slane %v239, 4
    %v277 = vrot.slane %v240, 4
    %v280 = vsel %vm84, %v157, %v258
    %v281 = vsel %vm84, %v158, %v259
    %v282 = vsel %vm84, %v185, %v264
    %v283 = vsel %vm84, %v186, %v265
    %v284 = vsel %vm84, %v125, %v270
    %v285 = vsel %vm84, %v126, %v271
    %v286 = vsel %vm84, %v226, %v276
    %v287 = vsel %vm84, %v227, %v277
    %v288 = vpack.c.bf16 %v282, %v280
    %v289 = vpack.c.bf16 %v283, %v281
    %v290 = vpack.c.bf16 %v286, %v284
    %v291 = vpack.c.bf16 %v287, %v285
    %v292 = vpack.c.bf16 %v254, %v254
    %v293 = vpack.c.bf16 %v255, %v255
    %v295 = vunpack.c.l.b16 %v36
    %v296 = vpack.c.b16 %v295, %v295
    %297 = vrot.lane.b32.xlu0 %v296, 112
    %v298 = vpop.permute.xlu0 %297
    %vm299 = vcmask 293888
    %v301 = vsel %vm299, %v298, 0
    %vm303 = vcmask 1041408
    %v305 = vsel %vm303, %v292, 0
    %v308 = vsel %vm303, %v293, 0
    %310 = vmatprep.subr.bf16.mxu0 %v289
    %311 = vmatpush1.bf16.msra.mxu0 %v288
    %312 = vmatprep.subr.bf16.mxu0 %v291
    %313 = vmatpush1.bf16.msra.mxu0 %v290
    %314 = vmatprep.subr.bf16.mxu0 %v308
    %315 = vmatpush1.bf16.msra.mxu0 %v305
    %316 = vmatprep.subr.bf16.mxu0 0
    %317 = vmatpush1.bf16.msra.mxu0 0
    %318 = vmatprep.subr.bf16.mxu0 0
    %319 = vmatpush1.bf16.msra.mxu0 0
    %320 = vmatprep.subr.bf16.mxu0 0
    %321 = vmatpush1.bf16.msra.mxu0 0
    %322 = vmatprep.subr.bf16.mxu0 0
    %323 = vmatpush1.bf16.msra.mxu0 0
    %324 = vmatprep.subr.bf16.mxu0 0
    %325 = vmatpush1.bf16.msra.mxu0 0
    %326 = vmatprep.subr.bf16.mxu0 0
    %327 = vmatpush1.bf16.msra.mxu0 0
    %328 = vmatprep.subr.bf16.mxu0 0
    %329 = vmatpush1.bf16.msra.mxu0 0
    %330 = vmatprep.subr.bf16.mxu0 0
    %331 = vmatpush1.bf16.msra.mxu0 0
    %332 = vmatprep.subr.bf16.mxu0 0
    %333 = vmatpush1.bf16.msra.mxu0 0
    %334 = vmatprep.subr.bf16.mxu0 0
    %335 = vmatpush1.bf16.msra.mxu0 0
    %336 = vmatprep.subr.bf16.mxu0 0
    %337 = vmatpush1.bf16.msra.mxu0 0
    %338 = vmatprep.subr.bf16.mxu0 0
    %339 = vmatpush1.bf16.msra.mxu0 0
    %340 = vmatprep.subr.bf16.mxu0 0
    %341 = vmatpush1.bf16.msra.mxu0 0
    %342 = vmatprep.mubr.bf16.mxu0 0
    %343 = vmatmul.mubr.bf16.gmra.mrb[0].mxu0 %v301
    %v344 = vpop.f32.mrb[0].mxu0
    %v345 = vadd.f32 0.0, %v344
    %v346 = vpop.f32.mrb[0].mxu0
    %v347 = vadd.f32 0.0, %v346
    %v348 = vpop.f32.mrb[0].mxu0
    %v349 = vpop.f32.mrb[0].mxu0
    %350 = vdwg.mxu0
    %v351 = vsel %vm84, %v345, 0.0
    %v352 = vsel %vm84, %v347, 0.0
    %v353 = vadd.f32 %v351, %v352
    %354 = vadd.xlane.f32.xlu0 %v353
    %v355 = vpop.xlane.xlu0 %354
    %v356 = vmul.f32 %v355, 0.00390625
    %v357 = vmul.f32 %v345, %v345
    %v358 = vmul.f32 %v347, %v347
    %v359 = vsel %vm84, %v357, 0.0
    %v360 = vsel %vm84, %v358, 0.0
    %v361 = vadd.f32 %v359, %v360
    %362 = vadd.xlane.f32.xlu0 %v361
    %v363 = vpop.xlane.xlu0 %362
    %v364 = vmul.f32 %v363, 0.00390625
    %v365 = vmul.f32 %v356, %v356
    %v366 = vsub.f32 %v364, %v365
    %v367 = vmax.f32 %v366, 0.0
    %v368 = vadd.f32 %v367, 1e-05
    %v369 = vrsqrt.pop %v368
    %v370 = vmul.f32 %v34, %v369
    %v371 = vmul.f32 %v356, %v370
    %373 = vrot.lane.b32.xlu0 %v371, 1
    %v374 = vpop.permute.xlu0 %373
    %v376 = vsub.f32 %v34, %v374
    %378 = vset.pattern.permute.xlu0 2
    %379 = vperm.xlu0 %378, %v370
    %v380 = vpop.permute.xlu0 %379
    %v382 = vmul.f32 %v345, %v380
    %v383 = vmul.f32 %v347, %v380
    %385 = vset.pattern.permute.xlu0 3
    %386 = vperm.xlu0 %385, %v376
    %v387 = vpop.permute.xlu0 %386
    %v389 = vadd.f32 %v382, %v387
    %v390 = vadd.f32 %v383, %v387
    %v391 = vmax.f32 %v389, 0.0
    %v392 = vmax.f32 %v390, 0.0
    %v393 = vld [vmem:[%s1] sm:$0xf]
    %v394 = vld [vmem:[%s1 + $0x4] sm:$0xf]
    %v395 = vpack.c.bf16 %v391, %v391
    %v396 = vpack.c.bf16 %v392, %v392
    %v399 = vunpack.c.l.b16 %v393
    %v400 = vunpack.c.l.b16 %v394
    %v401 = vpack.c.b16 %v400, %v399
    %402 = vrot.lane.b32.xlu0 %v401, 76
    %v403 = vpop.permute.xlu0 %402
    %vm404 = vcmask 31744
    %v406 = vsel %vm404, %v403, 0
    %v409 = vsel %vm303, %v395, 0
    %v412 = vsel %vm303, %v396, 0
    %414 = vmatprep.subr.bf16.mxu0 %v412
    %415 = vmatpush1.bf16.msra.mxu0 %v409
    %416 = vmatprep.subr.bf16.mxu0 0
    %417 = vmatpush1.bf16.msra.mxu0 0
    %418 = vmatprep.subr.bf16.mxu0 0
    %419 = vmatpush1.bf16.msra.mxu0 0
    %420 = vmatprep.subr.bf16.mxu0 0
    %421 = vmatpush1.bf16.msra.mxu0 0
    %422 = vmatprep.subr.bf16.mxu0 0
    %423 = vmatpush1.bf16.msra.mxu0 0
    %424 = vmatprep.subr.bf16.mxu0 0
    %425 = vmatpush1.bf16.msra.mxu0 0
    %426 = vmatprep.subr.bf16.mxu0 0
    %427 = vmatpush1.bf16.msra.mxu0 0
    %428 = vmatprep.subr.bf16.mxu0 0
    %429 = vmatpush1.bf16.msra.mxu0 0
    %430 = vmatprep.subr.bf16.mxu0 0
    %431 = vmatpush1.bf16.msra.mxu0 0
    %432 = vmatprep.subr.bf16.mxu0 0
    %433 = vmatpush1.bf16.msra.mxu0 0
    %434 = vmatprep.subr.bf16.mxu0 0
    %435 = vmatpush1.bf16.msra.mxu0 0
    %436 = vmatprep.subr.bf16.mxu0 0
    %437 = vmatpush1.bf16.msra.mxu0 0
    %438 = vmatprep.subr.bf16.mxu0 0
    %439 = vmatpush1.bf16.msra.mxu0 0
    %440 = vmatprep.subr.bf16.mxu0 0
    %441 = vmatpush1.bf16.msra.mxu0 0
    %442 = vmatprep.subr.bf16.mxu0 0
    %443 = vmatpush1.bf16.msra.mxu0 0
    %444 = vmatprep.subr.bf16.mxu0 0
    %445 = vmatpush1.bf16.msra.mxu0 0
    %446 = vmatprep.mubr.bf16.mxu0 0
    %447 = vmatmul.mubr.bf16.gmra.mrb[0].mxu0 %v406
    %v448 = vpop.f32.mrb[0].mxu0
    %v449 = vadd.f32 0.0, %v448
    %v450 = vpop.f32.mrb[0].mxu0
    %v451 = vadd.f32 0.0, %v450
    %v452 = vpop.f32.mrb[0].mxu0
    %v453 = vadd.f32 0.0, %v452
    %v454 = vpop.f32.mrb[0].mxu0
    %v455 = vadd.f32 0.0, %v454
    %456 = vdwg.mxu0
    %v457 = vadd.f32 %v449, %v451
    %458 = vadd.xlane.f32.xlu0 %v457
    %v459 = vpop.xlane.xlu0 %458
    %v460 = vadd.f32 %v453, %v455
    %461 = vadd.xlane.f32.xlu0 %v460
    %v462 = vpop.xlane.xlu0 %461
    %v463 = vmul.f32 %v459, 0.00390625
    %v464 = vmul.f32 %v462, 0.00390625
    %v465 = vmul.f32 %v449, %v449
    %v466 = vmul.f32 %v451, %v451
    %v467 = vmul.f32 %v453, %v453
    %v468 = vmul.f32 %v455, %v455
    %v469 = vadd.f32 %v465, %v466
    %470 = vadd.xlane.f32.xlu0 %v469
    %v471 = vpop.xlane.xlu0 %470
    %v472 = vadd.f32 %v467, %v468
    %473 = vadd.xlane.f32.xlu0 %v472
    %v474 = vpop.xlane.xlu0 %473
    %v475 = vmul.f32 %v471, 0.00390625
    %v476 = vmul.f32 %v474, 0.00390625
    %v477 = vmul.f32 %v463, %v463
    %v478 = vmul.f32 %v464, %v464
    %v479 = vsub.f32 %v475, %v477
    %v480 = vsub.f32 %v476, %v478
    %v481 = vmax.f32 %v479, 0.0
    %v482 = vmax.f32 %v480, 0.0
    %v483 = vadd.f32 %v481, 1e-05
    %v484 = vadd.f32 %v482, 1e-05
    %v485 = vrsqrt.pop %v483
    %v486 = vrsqrt.pop %v484
    %v487 = vmul.f32 %v34, %v485
    %v488 = vmul.f32 %v35, %v486
    %v489 = vmul.f32 %v463, %v487
    %v490 = vmul.f32 %v464, %v488
    %493 = vrot.lane.b32.xlu0 %v489, 1
    %v494 = vpop.permute.xlu0 %493
    %495 = vrot.lane.b32.xlu0 %v490, 1
    %v496 = vpop.permute.xlu0 %495
    %v499 = vsub.f32 %v34, %v494
    %v500 = vsub.f32 %v35, %v496
    %502 = vset.pattern.permute.xlu0 4
    %503 = vperm.xlu0 %502, %v487
    %v504 = vpop.permute.xlu0 %503
    %507 = vset.pattern.permute.xlu0 4
    %508 = vperm.xlu0 %507, %v488
    %v509 = vpop.permute.xlu0 %508
    %v511 = vmul.f32 %v449, %v504
    %v512 = vmul.f32 %v451, %v504
    %v513 = vmul.f32 %v453, %v509
    %v514 = vmul.f32 %v455, %v509
    %516 = vset.pattern.permute.xlu0 5
    %517 = vperm.xlu0 %516, %v499
    %v518 = vpop.permute.xlu0 %517
    %521 = vset.pattern.permute.xlu0 5
    %522 = vperm.xlu0 %521, %v500
    %v523 = vpop.permute.xlu0 %522
    %v525 = vadd.f32 %v511, %v518
    %v526 = vadd.f32 %v512, %v518
    %v527 = vadd.f32 %v513, %v523
    %v528 = vadd.f32 %v514, %v523
    %v529 = vadd.f32 %v525, %v30
    %v530 = vadd.f32 %v526, %v31
    %v531 = vadd.f32 %v527, %v32
    %v532 = vadd.f32 %v528, %v33
    %v533 = vmax.f32 %v529, 0.0
    %v534 = vmax.f32 %v530, 0.0
    %v535 = vmax.f32 %v531, 0.0
    %v536 = vmax.f32 %v532, 0.0
    %537 = vst [vmem:[#allocation5] sm:$0xff] %v533
    %538 = vst [vmem:[#allocation5 + $0x8] sm:$0xff] %v534
    %539 = vst [vmem:[#allocation5 + $0x10] sm:$0xff] %v535
    %540 = vst [vmem:[#allocation5 + $0x18] sm:$0xff] %v536
    // Predicated region
    $region18: #{tpu_custom_call.1} parent=1 // pred_check
      _
    $region19: #{tpu_custom_call.1} parent=1 // pred_check_branch
      %542 = sbr.rel (0) target = $region21
    $region20: #{tpu_custom_call.1} parent=1 // pred_region
      %s544 = ssub.s32 512, 512
      %545 = vsyncadd [#allocation4], %s544
      %s546 = sshll.u32 [#allocation5], 4
      %s547 = int_to_ptr.vmem [resolvable:$true] %s546
      %552 = dma.vmem_to_hbm [thread:$0]  %s547, 512, %s3, [#allocation4], 256, 256, 16
    $region21: #{tpu_custom_call.1} parent=1 // pred_fallthru
      _
    // Predicated region
    $region22: #{tpu_custom_call.1} parent=1 // pred_check
      _
    $region23: #{tpu_custom_call.1} parent=1 // pred_check_branch
      %554 = sbr.rel (0) target = $region25
    $region24: #{tpu_custom_call.1} parent=1 // pred_region
      %555 = dma.done [#allocation4], 512
    $region25: #{tpu_custom_call.1} parent=1 // pred_fallthru
      _
    %556 = vsyncpa [#allocation3], 1
    %557 = vsyncpa [#allocation4], 1

</llo_original>
